<compile_context>
chip_gen: v7x
topology: tpu7x:2x2x1
jax: 0.10.0
libtpu: 0.0.40
codegen_flags: <defaults>
</compile_context>

<pallas_src>
import math
import functools

import jax
import jax.numpy as jnp
from jax.experimental import pallas as pl
from jax.experimental.pallas import tpu as pltpu


# ----------------------------- small helpers ------------------------------ #

def _cdiv(a: int, b: int) -> int:
    return (a + b - 1) // b


def _round_up(x: int, m: int) -> int:
    return _cdiv(x, m) * m


def _balanced_tile(dim: int, cap: int, align: int) -> int:
    """Largest tile <= cap that splits `dim` into near-equal aligned tiles."""
    dim_a = _round_up(dim, align)
    if dim_a <= cap:
        return dim_a
    n_tiles = _cdiv(dim_a, cap)
    return _round_up(_cdiv(dim_a, n_tiles), align)


def _min_sublane(*dtypes) -> int:
    """(8,128) for 32-bit, (16,128) for 16-bit, (32,128) for 8-bit dtypes."""
    s = 8
    for d in dtypes:
        s = max(s, 8 * (4 // jnp.dtype(d).itemsize))
    return s


# ------------------------------- kernels ----------------------------------- #

def _gate_kernel_f32_out(x_ref, w_ref, b_ref, o_ref):
    """f32 output: accumulate K-partials directly into the resident o_ref."""
    k = pl.program_id(2)

    @pl.when(k == 0)
    def _():
        o_ref[...] = jnp.zeros_like(o_ref)

    x = x_ref[...]
    if x.dtype != w_ref.dtype:          # static (trace-time) check
        x = x.astype(w_ref.dtype)       # in-kernel cast -> bf16 MXU rate
    o_ref[...] += jnp.dot(x, w_ref[...], preferred_element_type=jnp.float32)

    @pl.when(k == pl.num_programs(2) - 1)
    def _():
        o_ref[...] = jax.nn.sigmoid(o_ref[...] + b_ref[...])


def _gate_kernel_scratch(x_ref, w_ref, b_ref, o_ref, acc_ref):
    """Non-f32 output: f32 accumulation in a VMEM scratch, single final cast."""
    k = pl.program_id(2)

    @pl.when(k == 0)
    def _():
        acc_ref[...] = jnp.zeros_like(acc_ref)

    x = x_ref[...]
    if x.dtype != w_ref.dtype:
        x = x.astype(w_ref.dtype)
    acc_ref[...] += jnp.dot(x, w_ref[...], preferred_element_type=jnp.float32)

    @pl.when(k == pl.num_programs(2) - 1)
    def _():
        o_ref[...] = jax.nn.sigmoid(acc_ref[...] + b_ref[...]).astype(o_ref.dtype)


# ------------------------------ host wrappers ------------------------------ #

def prepare_params(W, b, *, tn_cap: int = 1024, tk_cap: int = 1024,
                   compute_dtype=None):
    """One-time param prep (off the per-call path).

    W: (out_features, in_features) torch-layout Linear weight.
    b: (out_features,) bias.
    Returns (w_t_padded, bias_row_f32, meta) where meta holds the static tiling
    info needed by content_gate().
    """
    w_t = W.T                           # (K=in, N=out): kernel computes x @ W.T
    K, N = w_t.shape
    assert b.shape == (N,)

    TN = _balanced_tile(N, tn_cap, 128)
    TK = _balanced_tile(K, tk_cap, 128)
    Kp, Np = _round_up(K, TK), _round_up(N, TN)

    if (Kp, Np) != (K, N):
        w_t = jnp.pad(w_t, ((0, Kp - K), (0, Np - N)))
    if compute_dtype is not None:
        w_t = w_t.astype(compute_dtype)

    b_row = b.astype(jnp.float32)       # bias stays f32 regardless of compute dtype
    if Np != N:
        b_row = jnp.pad(b_row, (0, Np - N))
    b_row = b_row.reshape(1, Np)

    meta = dict(n_out=N, k_in=K, tn=TN, tk=TK)
    return w_t, b_row, meta


@functools.partial(jax.jit,
                   static_argnames=("n_out", "k_in", "tn", "tk", "tm_cap"))
def content_gate(x, w_t, b_row, *, n_out, k_in, tn, tk, tm_cap: int = 512):
    """sigmoid(x @ W.T + b) with (w_t, b_row, meta) from prepare_params()."""
    M, K = x.shape
    assert K == k_in, "x feature dim does not match prepared weight"
    Kp, Np = w_t.shape

    out_dtype = x.dtype
    sub = _min_sublane(x.dtype, out_dtype)
    TM = _balanced_tile(M, tm_cap, sub)
    Mp = _round_up(M, TM)

    if (Mp, Kp) != (M, K):              # only x is padded per call (K pad -> zero dot)
        x = jnp.pad(x, ((0, Mp - M), (0, Kp - K)))

    grid = (Mp // TM, Np // tn, Kp // tk)

    use_scratch = out_dtype != jnp.float32
    kernel = _gate_kernel_scratch if use_scratch else _gate_kernel_f32_out
    scratch = [pltpu.VMEM((TM, tn), jnp.float32)] if use_scratch else []

    out = pl.pallas_call(
        kernel,
        out_shape=jax.ShapeDtypeStruct((Mp, Np), out_dtype),
        grid_spec=pltpu.PrefetchScalarGridSpec(
            num_scalar_prefetch=0,
            grid=grid,
            in_specs=[
                pl.BlockSpec((TM, tk), lambda i, j, k: (i, k)),   # x tile
                pl.BlockSpec((tk, tn), lambda i, j, k: (k, j)),   # W.T tile
                pl.BlockSpec((1, tn), lambda i, j, k: (0, j)),    # bias tile
            ],
            out_specs=pl.BlockSpec((TM, tn), lambda i, j, k: (i, j)),
            scratch_shapes=scratch,
        ),
        compiler_params=pltpu.CompilerParams(
            dimension_semantics=("parallel", "parallel", "arbitrary"),
            # Large tiles need > the 16/32 MiB default scoped VMEM on v5e/v6e;
            # 48 MiB still leaves headroom under v7x's 64 MiB physical VMEM.
            vmem_limit_bytes=48 << 20,
        ),
    )(x, w_t, b_row)

    if (Mp, Np) != (M, n_out):
        out = out[:M, :n_out]
    return out


# ------------------------------ test harness ------------------------------- #

def _reference(x, W, b):
    return jax.nn.sigmoid(x @ W.T + b)


def _make_params(key, input_size, dtype=jnp.float32):
    kw, kb = jax.random.split(key)
    bound = 1.0 / math.sqrt(input_size)
    W = jax.random.uniform(kw, (input_size, input_size),
                           minval=-bound, maxval=bound, dtype=dtype)
    bvec = jax.random.uniform(kb, (input_size,),
                              minval=-bound, maxval=bound, dtype=dtype)
    return W, bvec


if __name__ == "__main__":
    key = jax.random.PRNGKey(0)
    k1, k2, k3, k4 = jax.random.split(key, 4)

    # --- Case 1: the module's shipped toy shape (B=8, D=32) ---------------
    batch, input_size = 8, 32
    W, bvec = _make_params(k1, input_size)
    x = jax.random.normal(k2, (batch, input_size), dtype=jnp.float32)

    w_t_p, b_p, meta = prepare_params(W, bvec)
    out = jax.block_until_ready(content_gate(x, w_t_p, b_p, **meta))
    ref = _reference(x, W, bvec)
    assert out.shape == (batch, input_size)
    assert jnp.allclose(out, ref, atol=1e-5, rtol=1e-5)

    # --- Case 2: multi-tile shape exercising K accumulation + padding ------
    batch2, input_size2 = 24, 640
    W2, bvec2 = _make_params(k3, input_size2)
    x2 = jax.random.normal(k4, (batch2, input_size2), dtype=jnp.float32)

    # Smaller caps force a (1, 2, 2) grid -> resident-output K accumulation.
    w2_t_p, b2_p, meta2 = prepare_params(W2, bvec2, tn_cap=512, tk_cap=512)
    out2 = jax.block_until_ready(content_gate(x2, w2_t_p, b2_p, **meta2))
    ref2 = _reference(x2, W2, bvec2)
    assert out2.shape == (batch2, input_size2)
    assert jnp.allclose(out2, ref2, atol=1e-5, rtol=1e-5)

    # --- Case 3: bf16 weight path (f32 in/out, bf16 MXU, f32 accumulate) ---
    w2_t_bf, b2_bf, meta2_bf = prepare_params(W2, bvec2,
                                              compute_dtype=jnp.bfloat16)
    out3 = jax.block_until_ready(content_gate(x2, w2_t_bf, b2_bf, **meta2_bf))
    assert out3.shape == (batch2, input_size2)
    assert jnp.allclose(out3, ref2, atol=3e-2, rtol=3e-2)

    print("KERNEL_OK")
</pallas_src>

<mosaic_0001>
module attributes {stable_mosaic.version = 11 : i64} {
  func.func @_gate_kernel_f32_out(%arg0: i32, %arg1: i32, %arg2: i32, %arg3: memref<8x128xf32, #tpu.memory_space<vmem>>, %arg4: memref<128x128xf32, #tpu.memory_space<vmem>>, %arg5: memref<1x128xf32, #tpu.memory_space<vmem>>, %arg6: memref<8x128xf32, #tpu.memory_space<vmem>>) attributes {dimension_semantics = [#tpu.dimension_semantics<parallel>, #tpu.dimension_semantics<parallel>, #tpu.dimension_semantics<arbitrary>], iteration_bounds = array<i64: 1, 1, 1>, scalar_prefetch = 0 : i64, scratch_operands = 0 : i64, tpu.core_type = #tpu.core_type<tc>, window_params = [{transform_indices = @transform_0, window_bounds = array<i64: 8, 128>}, {transform_indices = @transform_1, window_bounds = array<i64: 128, 128>}, {transform_indices = @transform_2, window_bounds = array<i64: 1, 128>}, {transform_indices = @transform_3, window_bounds = array<i64: 8, 128>}]} {
    %c0_i32 = arith.constant 0 : i32
    %0 = arith.cmpi eq, %arg2, %c0_i32 : i32
    %1 = arith.extui %0 : i1 to i32
    %c0_i32_0 = arith.constant 0 : i32
    %2 = arith.cmpi ne, %1, %c0_i32_0 : i32
    scf.if %2 {
      %cst_10 = arith.constant 0.000000e+00 : f32
      %12 = vector.broadcast %cst_10 : f32 to vector<8x128xf32>
      %c0_11 = arith.constant 0 : index
      %c0_12 = arith.constant 0 : index
      %13 = vector.load %arg6[%c0_11, %c0_12] : memref<8x128xf32, #tpu.memory_space<vmem>>, vector<8x128xf32>
      tpu.vector_store %arg6[%c0_11, %c0_12], %12 {strides = array<i32>} : memref<8x128xf32, #tpu.memory_space<vmem>>, vector<8x128xf32>,
    } else {
    }
    %c0 = arith.constant 0 : index
    %c0_1 = arith.constant 0 : index
    %3 = vector.load %arg3[%c0, %c0_1] : memref<8x128xf32, #tpu.memory_space<vmem>>, vector<8x128xf32>
    %c0_2 = arith.constant 0 : index
    %c0_3 = arith.constant 0 : index
    %4 = vector.load %arg6[%c0_2, %c0_3] : memref<8x128xf32, #tpu.memory_space<vmem>>, vector<8x128xf32>
    %c0_4 = arith.constant 0 : index
    %c0_5 = arith.constant 0 : index
    %5 = vector.load %arg4[%c0_4, %c0_5] : memref<128x128xf32, #tpu.memory_space<vmem>>, vector<128x128xf32>
    %cst = arith.constant dense<0.000000e+00> : vector<8x128xf32>
    %6 = tpu.matmul %3, %5, %cst {dimension_numbers = #tpu.dot_dimension_numbers<[1], [0], [0], [1], [0, 0, 1, 1], [], []>} : vector<8x128xf32>, vector<128x128xf32>, vector<8x128xf32> -> vector<8x128xf32>
    %7 = arith.addf %4, %6 : vector<8x128xf32>
    %c0_6 = arith.constant 0 : index
    %c0_7 = arith.constant 0 : index
    %8 = vector.load %arg6[%c0_6, %c0_7] : memref<8x128xf32, #tpu.memory_space<vmem>>, vector<8x128xf32>
    tpu.vector_store %arg6[%c0_6, %c0_7], %7 {strides = array<i32>} : memref<8x128xf32, #tpu.memory_space<vmem>>, vector<8x128xf32>,
    %c0_i32_8 = arith.constant 0 : i32
    %9 = arith.cmpi eq, %arg2, %c0_i32_8 : i32
    %10 = arith.extui %9 : i1 to i32
    %c0_i32_9 = arith.constant 0 : i32
    %11 = arith.cmpi ne, %10, %c0_i32_9 : i32
    scf.if %11 {
      %c0_10 = arith.constant 0 : index
      %c0_11 = arith.constant 0 : index
      %12 = vector.load %arg6[%c0_10, %c0_11] : memref<8x128xf32, #tpu.memory_space<vmem>>, vector<8x128xf32>
      %c0_12 = arith.constant 0 : index
      %c0_13 = arith.constant 0 : index
      %13 = vector.load %arg5[%c0_12, %c0_13] : memref<1x128xf32, #tpu.memory_space<vmem>>, vector<1x128xf32>
      %14 = vector.broadcast %13 : vector<1x128xf32> to vector<8x128xf32>
      %15 = arith.addf %12, %14 : vector<8x128xf32>
      %16 = arith.negf %15 : vector<8x128xf32>
      %17 = math.exp %16 : vector<8x128xf32>
      %cst_14 = arith.constant 1.000000e+00 : f32
      %18 = vector.broadcast %cst_14 : f32 to vector<8x128xf32>
      %19 = arith.addf %18, %17 : vector<8x128xf32>
      %20 = arith.divf %18, %19 : vector<8x128xf32>
      %c0_15 = arith.constant 0 : index
      %c0_16 = arith.constant 0 : index
      %21 = vector.load %arg6[%c0_15, %c0_16] : memref<8x128xf32, #tpu.memory_space<vmem>>, vector<8x128xf32>
      tpu.vector_store %arg6[%c0_15, %c0_16], %20 {strides = array<i32>} : memref<8x128xf32, #tpu.memory_space<vmem>>, vector<8x128xf32>,
    } else {
    }
    return
  }
  func.func @transform_0(%arg0: i32, %arg1: i32, %arg2: i32) -> (i32, i32) {
    %c0_i32 = arith.constant 0 : i32
    return %arg0, %arg2 : i32, i32
  }
  func.func @transform_1(%arg0: i32, %arg1: i32, %arg2: i32) -> (i32, i32) {
    %c0_i32 = arith.constant 0 : i32
    return %arg2, %arg1 : i32, i32
  }
  func.func @transform_2(%arg0: i32, %arg1: i32, %arg2: i32) -> (i32, i32) {
    %c0_i32 = arith.constant 0 : i32
    %c0_i32_0 = arith.constant 0 : i32
    return %c0_i32, %arg1 : i32, i32
  }
  func.func @transform_3(%arg0: i32, %arg1: i32, %arg2: i32) -> (i32, i32) {
    %c0_i32 = arith.constant 0 : i32
    return %arg0, %arg1 : i32, i32
  }
}

</mosaic_0001>

<llo_original>
// kernel: content_gate.1
$region0: #{content_gate.1}
  #allocation0 [shape = 'u32[]', space=smem, size = 0x4, offset = 0x4, fixed_abs, tag = 'smem constant byte address 0x4 - core index']
  #allocation1 [shape = 'u32[144,128]{1,0:T(1,128)}', space=vmem, size = 0x12000, scoped, tag = 'internal scratch']
  %s0 = inlined_call_operand.vmem [shape: f32[8,128], index: 0, kind: input, shape index: {}]
  %s1 = inlined_call_operand.hbm [shape: f32[128,128], index: 1, kind: input, shape index: {}]
  %s2 = inlined_call_operand.vmem [shape: f32[1,128], index: 2, kind: input, shape index: {}]
  %s3 = inlined_call_operand.hbm [shape: f32[8,128], index: 3, kind: output, shape index: {}]
  %s4 = sld [smem:[#allocation0]]
  $region34: #{content_gate.1} parent=0
    _
  %s6 = ssub.s32 1, %s4
  %s7 = scalar_select 0, %s6, %s4
  $region1: #{content_gate.1} parent=0
    #allocation2 [shape = 'u8[65536]{0}', space=vmem, size = 0x10000, scoped, tag = 'input window, operand 1, single buffered']
    #allocation3 [shape = 's32[1]{0}', space=sflag, size = 0x4, scoped, tag = 'scoped memory for content_gate.1']
    #allocation4 [shape = 's32[1]{0}', space=sflag, size = 0x4, scoped, tag = 'scoped memory for content_gate.1']
    #allocation5 [shape = 'u8[4096]{0}', space=vmem, size = 0x1000, scoped, tag = 'output window, operand 0, single buffered']
    %8 = vsyncpa [#allocation3], 0
    %9 = vsyncpa [#allocation4], 0
    // Predicated region
    $region2: #{content_gate.1} parent=1 // pred_check
      _
    $region3: #{content_gate.1} parent=1 // pred_check_branch
      %11 = sbr.rel (0) target = $region5
    $region4: #{content_gate.1} parent=1 // pred_region
      _
    $region5: #{content_gate.1} parent=1 // pred_fallthru
      _
    // Predicated region
    $region6: #{content_gate.1} parent=1 // pred_check
      _
    $region7: #{content_gate.1} parent=1 // pred_check_branch
      %13 = sbr.rel (0) target = $region9
    $region8: #{content_gate.1} parent=1 // pred_region
      %s15 = ssub.s32 2048, 2048
      %16 = vsyncadd [#allocation3], %s15
      %s17 = sshll.u32 [#allocation2], 4
      %s18 = int_to_ptr.vmem [resolvable:$true] %s17
      %23 = dma.hbm_to_vmem [thread:$0]  %s1, 2048, %s18, [#allocation3], 128, 128, 8
    $region9: #{content_gate.1} parent=1 // pred_fallthru
      _
    // Predicated region
    $region10: #{content_gate.1} parent=1 // pred_check
      _
    $region11: #{content_gate.1} parent=1 // pred_check_branch
      %25 = sbr.rel (0) target = $region13
    $region12: #{content_gate.1} parent=1 // pred_region
      _
    $region13: #{content_gate.1} parent=1 // pred_fallthru
      _
    // Predicated region
    $region14: #{content_gate.1} parent=1 // pred_check
      _
    $region15: #{content_gate.1} parent=1 // pred_check_branch
      %27 = sbr.rel (0) target = $region17
    $region16: #{content_gate.1} parent=1 // pred_region
      %28 = dma.done [#allocation3], 2048
    $region17: #{content_gate.1} parent=1 // pred_fallthru
      _
    %p29 = scmp.eq.s32.totalorder 0, 0
    // Predicated region
    $region18: #{content_gate.1} parent=1 // pred_check
      %p30 = pneg %p29
    $region19: #{content_gate.1} parent=1 // pred_check_branch
      %32 = sbr.rel (%p30) target = $region21
    $region20: #{content_gate.1} parent=1 // pred_region
      %33 = vst [vmem:[#allocation5] sm:$0xff] 0.0
    $region21: #{content_gate.1} parent=1 // pred_fallthru
      _
    %v34 = vld [vmem:[%s0] sm:$0xff]
    %v35 = vld [vmem:[#allocation5] sm:$0xff]
    %v36 = vld [vmem:[#allocation2] sm:$0xff]
    %v37 = vld [vmem:[#allocation2 + $0x8] sm:$0xff]
    %v38 = vld [vmem:[#allocation2 + $0x10] sm:$0xff]
    %v39 = vld [vmem:[#allocation2 + $0x18] sm:$0xff]
    %v40 = vld [vmem:[#allocation2 + $0x20] sm:$0xff]
    %v41 = vld [vmem:[#allocation2 + $0x28] sm:$0xff]
    %v42 = vld [vmem:[#allocation2 + $0x30] sm:$0xff]
    %v43 = vld [vmem:[#allocation2 + $0x38] sm:$0xff]
    %v44 = vld [vmem:[#allocation2 + $0x40] sm:$0xff]
    %v45 = vld [vmem:[#allocation2 + $0x48] sm:$0xff]
    %v46 = vld [vmem:[#allocation2 + $0x50] sm:$0xff]
    %v47 = vld [vmem:[#allocation2 + $0x58] sm:$0xff]
    %v48 = vld [vmem:[#allocation2 + $0x60] sm:$0xff]
    %v49 = vld [vmem:[#allocation2 + $0x68] sm:$0xff]
    %v50 = vld [vmem:[#allocation2 + $0x70] sm:$0xff]
    %v51 = vld [vmem:[#allocation2 + $0x78] sm:$0xff]
    %52 = vmatprep.subr.mxu0 0.0
    %53 = vmatpush1.msra.mxu0 %v36
    %54 = vmatprep.subr.mxu0 0.0
    %55 = vmatpush1.msra.mxu0 %v37
    %56 = vmatprep.subr.mxu0 0.0
    %57 = vmatpush1.msra.mxu0 %v38
    %58 = vmatprep.subr.mxu0 0.0
    %59 = vmatpush1.msra.mxu0 %v39
    %60 = vmatprep.subr.mxu0 0.0
    %61 = vmatpush1.msra.mxu0 %v40
    %62 = vmatprep.subr.mxu0 0.0
    %63 = vmatpush1.msra.mxu0 %v41
    %64 = vmatprep.subr.mxu0 0.0
    %65 = vmatpush1.msra.mxu0 %v42
    %66 = vmatprep.subr.mxu0 0.0
    %67 = vmatpush1.msra.mxu0 %v43
    %68 = vmatprep.subr.mxu0 0.0
    %69 = vmatpush1.msra.mxu0 %v44
    %70 = vmatprep.subr.mxu0 0.0
    %71 = vmatpush1.msra.mxu0 %v45
    %72 = vmatprep.subr.mxu0 0.0
    %73 = vmatpush1.msra.mxu0 %v46
    %74 = vmatprep.subr.mxu0 0.0
    %75 = vmatpush1.msra.mxu0 %v47
    %76 = vmatprep.subr.mxu0 0.0
    %77 = vmatpush1.msra.mxu0 %v48
    %78 = vmatprep.subr.mxu0 0.0
    %79 = vmatpush1.msra.mxu0 %v49
    %80 = vmatprep.subr.mxu0 0.0
    %81 = vmatpush1.msra.mxu0 %v50
    %82 = vmatprep.subr.mxu0 0.0
    %83 = vmatpush1.msra.mxu0 %v51
    %84 = vmatprep.subr.mxu0 0.0
    %85 = vmatpush1.msra.mxu0 0.0
    %86 = vmatprep.subr.mxu0 0.0
    %87 = vmatpush1.msra.mxu0 0.0
    %88 = vmatprep.subr.mxu0 0.0
    %89 = vmatpush1.msra.mxu0 0.0
    %90 = vmatprep.subr.mxu0 0.0
    %91 = vmatpush1.msra.mxu0 0.0
    %92 = vmatprep.subr.mxu0 0.0
    %93 = vmatpush1.msra.mxu0 0.0
    %94 = vmatprep.subr.mxu0 0.0
    %95 = vmatpush1.msra.mxu0 0.0
    %96 = vmatprep.subr.mxu0 0.0
    %97 = vmatpush1.msra.mxu0 0.0
    %98 = vmatprep.subr.mxu0 0.0
    %99 = vmatpush1.msra.mxu0 0.0
    %100 = vmatprep.subr.mxu0 0.0
    %101 = vmatpush1.msra.mxu0 0.0
    %102 = vmatprep.subr.mxu0 0.0
    %103 = vmatpush1.msra.mxu0 0.0
    %104 = vmatprep.subr.mxu0 0.0
    %105 = vmatpush1.msra.mxu0 0.0
    %106 = vmatprep.subr.mxu0 0.0
    %107 = vmatpush1.msra.mxu0 0.0
    %108 = vmatprep.subr.mxu0 0.0
    %109 = vmatpush1.msra.mxu0 0.0
    %110 = vmatprep.subr.mxu0 0.0
    %111 = vmatpush1.msra.mxu0 0.0
    %112 = vmatprep.subr.mxu0 0.0
    %113 = vmatpush1.msra.mxu0 0.0
    %114 = vmatprep.subr.mxu0 0.0
    %115 = vmatpush1.msra.mxu0 0.0
    %116 = vmatprep.mubr.f32.mxu0 0.0
    %117 = vmatmul.mubr.f32.gmra.mrb[0].mxu0 %v34
    %v118 = vpop.f32.mrb[0].mxu0
    %v119 = vadd.f32 0.0, %v118
    %v120 = vpop.f32.mrb[0].mxu0
    %121 = vdwg.mxu0
    %v122 = vadd.f32 %v35, %v119
    %123 = vst [vmem:[#allocation5] sm:$0xff] %v122
    // Predicated region
    $region22: #{content_gate.1} parent=1 // pred_check
      %p124 = pneg %p29
    $region23: #{content_gate.1} parent=1 // pred_check_branch
      %126 = sbr.rel (%p124) target = $region25
    $region24: #{content_gate.1} parent=1 // pred_region
      %v127 = vld [vmem:[#allocation5] sm:$0xff]
      %v128 = vld [vmem:[%s2] sm:$0x1]
      %v130 = vlaneseq
      %v131 = vshrl.u32 %v130, 7
      %v132 = vsub.s32 0, %v131
      %v133 = vrot.slane %v128, %v132
      %v135 = vadd.f32 %v127, %v133
      %v136 = vxor.u32 %v135, 2147483648
      %v137 = vmul.f32 %v136, 1.442695
      %v138 = vpow.pop %v137
      %v139 = vadd.f32 %v138, 1.0
      %v140 = vrcp.pop %v139
      %v141 = vmul.f32 1.0, %v140
      %142 = vst [vmem:[#allocation5] sm:$0xff] %v141
    $region25: #{content_gate.1} parent=1 // pred_fallthru
      _
    // Predicated region
    $region26: #{content_gate.1} parent=1 // pred_check
      _
    $region27: #{content_gate.1} parent=1 // pred_check_branch
      %144 = sbr.rel (0) target = $region29
    $region28: #{content_gate.1} parent=1 // pred_region
      %s146 = ssub.s32 128, 128
      %147 = vsyncadd [#allocation4], %s146
      %s149 = sshll.u32 [#allocation5], 4
      %s150 = int_to_ptr.vmem [resolvable:$true] %s149
      %152 = dma.vmem_to_hbm [thread:$0]  %s150, 128, %s3, [#allocation4]
    $region29: #{content_gate.1} parent=1 // pred_fallthru
      _
    // Predicated region
    $region30: #{content_gate.1} parent=1 // pred_check
      _
    $region31: #{content_gate.1} parent=1 // pred_check_branch
      %154 = sbr.rel (0) target = $region33
    $region32: #{content_gate.1} parent=1 // pred_region
      %155 = dma.done [#allocation4], 128
    $region33: #{content_gate.1} parent=1 // pred_fallthru
      _
    %156 = vsyncpa [#allocation3], 1
    %157 = vsyncpa [#allocation4], 1

</llo_original>
